<compile_context>
chip_gen: v7x
topology: tpu7x:2x2x1
jax: 0.10.0
libtpu: 0.0.40
codegen_flags: <defaults>
</compile_context>

<pallas_src>
import functools

import jax
import jax.numpy as jnp
from jax.experimental import pallas as pl
from jax.experimental.pallas import tpu as pltpu


def _unembed_kernel(x_ref, w_ref, b_ref, o_ref):
    # x_ref: (tm, d_model)  activation tile (resident across the vocab axis)
    # w_ref: (d_model, tn)  one vocab tile of the weight (streamed)
    # b_ref: (1, tn)        matching bias tile (f32)
    # o_ref: (tm, tn)       output logits tile
    acc = jnp.dot(x_ref[...], w_ref[...], preferred_element_type=jnp.float32)
    o_ref[...] = (acc + b_ref[...]).astype(o_ref.dtype)


def _tile_vmem_bytes(tm, tn, d_model, x_bytes, w_bytes, o_bytes):
    """Double-buffered VMEM footprint estimate for one grid step."""
    x_tile = tm * d_model * x_bytes
    w_tile = d_model * tn * w_bytes
    b_tile = tn * 4  # bias kept in f32
    o_tile = tm * tn * o_bytes
    return 2 * (x_tile + w_tile + b_tile + o_tile)


def _shrink_aligned(v, floor, align):
    """Halve v, keeping it a multiple of `align` and >= floor."""
    return max(floor, ((v // 2) // align) * align)


def _pick_tiles(M, d_model, d_vocab, x_bytes, w_bytes, o_bytes, tm, tn,
                vmem_budget):
    # Clamp tiles to actual dims (full-dim blocks are always legal).
    tm = min(tm, M)
    tn = min(tn, d_vocab)

    def over(tm_, tn_):
        return (_tile_vmem_bytes(tm_, tn_, d_model, x_bytes, w_bytes, o_bytes)
                > vmem_budget)

    # Shrink order keeps tm (the MXU-roofline knob) as large as possible:
    # tn -> 256 first, then tm -> 512, then tn -> 128, then tm -> 8.
    while over(tm, tn):
        if tn > 256:
            tn = _shrink_aligned(tn, 256, 128)
        elif tm > 512:
            tm = _shrink_aligned(tm, 512, 8)
        elif tn > 128:
            tn = _shrink_aligned(tn, 128, 128)
        elif tm > 8:
            tm = _shrink_aligned(tm, 8, 8)
        else:
            # TODO(synk): K (d_model) grid axis with f32 accumulator for the
            # d_model >~ 40k f32 regime; floor tiles already fit up to that.
            break
    return tm, tn


def _vmem_capacity_bytes():
    """Physical per-core VMEM, with robust fallbacks."""
    try:
        info = pltpu.get_tpu_info()
        cap = getattr(info, "vmem_capacity_bytes", None)
        if cap:
            return int(cap)
    except Exception:
        pass
    try:
        kind = jax.devices()[0].device_kind.lower()
    except Exception:
        kind = ""
    if ("v7" in kind) or ("7x" in kind) or ("tpu7" in kind):
        return 64 << 20
    # v5e / v6e (and a safe default for other TC generations).
    return 128 << 20


def _vmem_plan(cap_phys):
    """(tile budget, vmem_limit cap) per generation."""
    if cap_phys <= (64 << 20):
        # v7x: 64 MiB physical per TC; leave headroom for internal scratch.
        return 44 << 20, 52 << 20
    # v5e / v6e: 128 MiB physical VMEM.
    return 92 << 20, 108 << 20


@functools.partial(jax.jit, static_argnames=("tm", "tn", "compute_dtype"))
def unembed(x, w, b, *, tm=1024, tn=512, compute_dtype=None):
    """x: [B, S, d_model], w: [d_model, d_vocab], b: [d_vocab] -> [B, S, d_vocab].

    compute_dtype: optional dtype (e.g. jnp.bfloat16) to cast x/w to before the
    matmul; accumulation stays f32 and the output keeps x's original dtype.
    """
    B, S, d_model = x.shape
    d_vocab = w.shape[1]
    M = B * S
    out_dtype = x.dtype

    if compute_dtype is not None:
        x = x.astype(compute_dtype)
        w = w.astype(compute_dtype)

    x2 = x.reshape(M, d_model)
    b2 = b.astype(jnp.float32).reshape(1, d_vocab)

    x_bytes = x.dtype.itemsize
    w_bytes = w.dtype.itemsize
    o_bytes = jnp.dtype(out_dtype).itemsize

    cap_phys = _vmem_capacity_bytes()
    vmem_budget, vmem_cap = _vmem_plan(cap_phys)
    tm, tn = _pick_tiles(M, d_model, d_vocab, x_bytes, w_bytes, o_bytes,
                         tm, tn, vmem_budget)

    grid = (pl.cdiv(M, tm), pl.cdiv(d_vocab, tn))
    num_m_tiles = grid[0]

    vmem_est = _tile_vmem_bytes(tm, tn, d_model, x_bytes, w_bytes, o_bytes)
    vmem_limit = int(min(vmem_cap, max(vmem_est + (8 << 20), 32 << 20)))

    cost = pl.CostEstimate(
        flops=2 * M * d_model * d_vocab,
        transcendentals=0,
        bytes_accessed=(M * d_model * x_bytes
                        # weight is re-streamed once per M tile
                        + num_m_tiles * d_model * d_vocab * w_bytes
                        + d_vocab * 4
                        + M * d_vocab * o_bytes),
    )

    out = pl.pallas_call(
        _unembed_kernel,
        out_shape=jax.ShapeDtypeStruct((M, d_vocab), out_dtype),
        grid_spec=pltpu.PrefetchScalarGridSpec(
            num_scalar_prefetch=0,
            grid=grid,
            in_specs=[
                # Activation tile: depends only on i -> revisited (not re-DMA'd)
                # while the inner vocab axis streams the weight.
                pl.BlockSpec((tm, d_model), lambda i, j: (i, 0)),
                pl.BlockSpec((d_model, tn), lambda i, j: (0, j)),  # weight tile
                pl.BlockSpec((1, tn), lambda i, j: (0, j)),        # bias tile
            ],
            out_specs=pl.BlockSpec((tm, tn), lambda i, j: (i, j)),
        ),
        compiler_params=pltpu.CompilerParams(
            # Both axes parallel: with a single M tile (inference) the megacore
            # split lands on the vocab axis, halving per-TC weight traffic.
            dimension_semantics=("parallel", "parallel"),
            vmem_limit_bytes=vmem_limit,
        ),
        cost_estimate=cost,
    )(x2, w, b2)

    return out.reshape(B, S, d_vocab)


if __name__ == "__main__":
    # Small config consistent with the module: d_model=32, d_vocab=256,
    # init_range=0.02 (GPT-style default), batch=2, seq=8.
    batch, seq, d_model, d_vocab = 2, 8, 32, 256
    init_range = 0.02

    key = jax.random.PRNGKey(0)
    kx, kw, kb = jax.random.split(key, 3)

    x = jax.random.normal(kx, (batch, seq, d_model), dtype=jnp.float32)
    # PyTorch nn.Linear weight shape is (d_vocab, d_model); we keep the
    # transposed layout (d_model, d_vocab) for the kernel.
    w = init_range * jax.random.normal(kw, (d_model, d_vocab), dtype=jnp.float32)
    b = init_range * jax.random.normal(kb, (d_vocab,), dtype=jnp.float32)

    ref = x @ w + b

    # Default path: keeps the module's f32 semantics exactly.
    logits = unembed(x, w, b)
    jax.block_until_ready(logits)
    assert logits.shape == (batch, seq, d_vocab)
    assert jnp.allclose(logits, ref, atol=1e-5, rtol=1e-5)

    # Perf path: bf16 HBM streams + native bf16 MXU, f32 accumulation.
    logits_bf16 = unembed(x, w, b, compute_dtype=jnp.bfloat16)
    jax.block_until_ready(logits_bf16)
    assert logits_bf16.shape == (batch, seq, d_vocab)
    assert jnp.allclose(logits_bf16, ref, atol=1e-2, rtol=5e-2)

    print("KERNEL_OK")
</pallas_src>

<mosaic_0001>
module attributes {stable_mosaic.version = 11 : i64} {
  func.func @_unembed_kernel(%arg0: i32, %arg1: i32, %arg2: memref<16x32xf32, #tpu.memory_space<vmem>>, %arg3: memref<32x256xf32, #tpu.memory_space<vmem>>, %arg4: memref<1x256xf32, #tpu.memory_space<vmem>>, %arg5: memref<16x256xf32, #tpu.memory_space<vmem>>) attributes {dimension_semantics = [#tpu.dimension_semantics<parallel>, #tpu.dimension_semantics<parallel>], iteration_bounds = array<i64: 1, 1>, scalar_prefetch = 0 : i64, scratch_operands = 0 : i64, tpu.core_type = #tpu.core_type<tc>, window_params = [{transform_indices = @transform_0, window_bounds = array<i64: 16, 32>}, {transform_indices = @transform_1, window_bounds = array<i64: 32, 256>}, {transform_indices = @transform_2, window_bounds = array<i64: 1, 256>}, {transform_indices = @transform_3, window_bounds = array<i64: 16, 256>}]} {
    %c0 = arith.constant 0 : index
    %c0_0 = arith.constant 0 : index
    %0 = vector.load %arg2[%c0, %c0_0] : memref<16x32xf32, #tpu.memory_space<vmem>>, vector<16x32xf32>
    %c0_1 = arith.constant 0 : index
    %c0_2 = arith.constant 0 : index
    %1 = vector.load %arg3[%c0_1, %c0_2] : memref<32x256xf32, #tpu.memory_space<vmem>>, vector<32x256xf32>
    %cst = arith.constant dense<0.000000e+00> : vector<16x256xf32>
    %2 = tpu.matmul %0, %1, %cst {dimension_numbers = #tpu.dot_dimension_numbers<[1], [0], [0], [1], [0, 0, 1, 1], [], []>} : vector<16x32xf32>, vector<32x256xf32>, vector<16x256xf32> -> vector<16x256xf32>
    %c0_3 = arith.constant 0 : index
    %c0_4 = arith.constant 0 : index
    %3 = vector.load %arg4[%c0_3, %c0_4] : memref<1x256xf32, #tpu.memory_space<vmem>>, vector<1x256xf32>
    %4 = vector.broadcast %3 : vector<1x256xf32> to vector<16x256xf32>
    %5 = arith.addf %2, %4 : vector<16x256xf32>
    %c0_5 = arith.constant 0 : index
    %c0_6 = arith.constant 0 : index
    %6 = vector.load %arg5[%c0_5, %c0_6] : memref<16x256xf32, #tpu.memory_space<vmem>>, vector<16x256xf32>
    tpu.vector_store %arg5[%c0_5, %c0_6], %5 {strides = array<i32>} : memref<16x256xf32, #tpu.memory_space<vmem>>, vector<16x256xf32>,
    return
  }
  func.func @transform_0(%arg0: i32, %arg1: i32) -> (i32, i32) {
    %c0_i32 = arith.constant 0 : i32
    %c0_i32_0 = arith.constant 0 : i32
    return %arg0, %c0_i32 : i32, i32
  }
  func.func @transform_1(%arg0: i32, %arg1: i32) -> (i32, i32) {
    %c0_i32 = arith.constant 0 : i32
    %c0_i32_0 = arith.constant 0 : i32
    return %c0_i32, %arg1 : i32, i32
  }
  func.func @transform_2(%arg0: i32, %arg1: i32) -> (i32, i32) {
    %c0_i32 = arith.constant 0 : i32
    %c0_i32_0 = arith.constant 0 : i32
    return %c0_i32, %arg1 : i32, i32
  }
  func.func @transform_3(%arg0: i32, %arg1: i32) -> (i32, i32) {
    %c0_i32 = arith.constant 0 : i32
    return %arg0, %arg1 : i32, i32
  }
}

</mosaic_0001>

<llo_original>
// kernel: unembed.1
$region0: #{unembed.1}
  #allocation0 [shape = 'u32[]', space=smem, size = 0x4, offset = 0x4, fixed_abs, tag = 'smem constant byte address 0x4 - core index']
  #allocation1 [shape = 'u32[144,128]{1,0:T(1,128)}', space=vmem, size = 0x12000, scoped, tag = 'internal scratch']
  %s0 = inlined_call_operand.hbm [shape: f32[16,32], index: 0, kind: input, shape index: {}]
  %s1 = inlined_call_operand.hbm [shape: f32[32,256], index: 1, kind: input, shape index: {}]
  %s2 = inlined_call_operand.vmem [shape: f32[1,256], index: 2, kind: input, shape index: {}]
  %s3 = inlined_call_operand.hbm [shape: f32[16,256], index: 3, kind: output, shape index: {}]
  %s4 = sld [smem:[#allocation0]]
  $region30: #{unembed.1} parent=0
    _
  %s6 = ssub.s32 1, %s4
  %s7 = scalar_select 0, %s6, %s4
  $region1: #{unembed.1} parent=0
    #allocation2 [shape = 'u8[8192]{0}', space=vmem, size = 0x2000, scoped, tag = 'input window, operand 0, single buffered']
    #allocation3 [shape = 's32[1]{0}', space=sflag, size = 0x4, scoped, tag = 'scoped memory for unembed.1']
    #allocation4 [shape = 's32[1]{0}', space=sflag, size = 0x4, scoped, tag = 'scoped memory for unembed.1']
    #allocation5 [shape = 'u8[32768]{0}', space=vmem, size = 0x8000, scoped, tag = 'input window, operand 1, single buffered']
    #allocation6 [shape = 's32[1]{0}', space=sflag, size = 0x4, scoped, tag = 'scoped memory for unembed.1']
    #allocation7 [shape = 'u8[16384]{0}', space=vmem, size = 0x4000, scoped, tag = 'output window, operand 0, single buffered']
    %8 = vsyncpa [#allocation3], 0
    %9 = vsyncpa [#allocation6], 0
    %10 = vsyncpa [#allocation4], 0
    // Predicated region
    $region2: #{unembed.1} parent=1 // pred_check
      _
    $region3: #{unembed.1} parent=1 // pred_check_branch
      %12 = sbr.rel (0) target = $region5
    $region4: #{unembed.1} parent=1 // pred_region
      %s14 = ssub.s32 256, 256
      %15 = vsyncadd [#allocation3], %s14
      %s16 = sshll.u32 [#allocation2], 4
      %s17 = int_to_ptr.vmem [resolvable:$true] %s16
      %22 = dma.hbm_to_vmem [thread:$0]  %s0, 256, %s17, [#allocation3], 128, 128, 8
    $region5: #{unembed.1} parent=1 // pred_fallthru
      _
    // Predicated region
    $region6: #{unembed.1} parent=1 // pred_check
      _
    $region7: #{unembed.1} parent=1 // pred_check_branch
      %24 = sbr.rel (0) target = $region9
    $region8: #{unembed.1} parent=1 // pred_region
      %s26 = ssub.s32 1024, 1024
      %27 = vsyncadd [#allocation6], %s26
      %s28 = sshll.u32 [#allocation5], 4
      %s29 = int_to_ptr.vmem [resolvable:$true] %s28
      %34 = dma.hbm_to_vmem [thread:$0]  %s1, 1024, %s29, [#allocation6], 256, 256, 16
    $region9: #{unembed.1} parent=1 // pred_fallthru
      _
    // Predicated region
    $region10: #{unembed.1} parent=1 // pred_check
      _
    $region11: #{unembed.1} parent=1 // pred_check_branch
      %36 = sbr.rel (0) target = $region13
    $region12: #{unembed.1} parent=1 // pred_region
      _
    $region13: #{unembed.1} parent=1 // pred_fallthru
      _
    // Predicated region
    $region14: #{unembed.1} parent=1 // pred_check
      _
    $region15: #{unembed.1} parent=1 // pred_check_branch
      %38 = sbr.rel (0) target = $region17
    $region16: #{unembed.1} parent=1 // pred_region
      %39 = dma.done [#allocation3], 256
    $region17: #{unembed.1} parent=1 // pred_fallthru
      _
    // Predicated region
    $region18: #{unembed.1} parent=1 // pred_check
      _
    $region19: #{unembed.1} parent=1 // pred_check_branch
      %41 = sbr.rel (0) target = $region21
    $region20: #{unembed.1} parent=1 // pred_region
      %42 = dma.done [#allocation6], 1024
    $region21: #{unembed.1} parent=1 // pred_fallthru
      _
    %v43 = vld [vmem:[#allocation2] sm:$0xff]
    %v44 = vld [vmem:[#allocation2 + $0x8] sm:$0xff]
    %v45 = vld [vmem:[#allocation5] sm:$0xff]
    %v46 = vld [vmem:[#allocation5 + $0x8] sm:$0xff]
    %v47 = vld [vmem:[#allocation5 + $0x10] sm:$0xff]
    %v48 = vld [vmem:[#allocation5 + $0x18] sm:$0xff]
    %v49 = vld [vmem:[#allocation5 + $0x20] sm:$0xff]
    %v50 = vld [vmem:[#allocation5 + $0x28] sm:$0xff]
    %v51 = vld [vmem:[#allocation5 + $0x30] sm:$0xff]
    %v52 = vld [vmem:[#allocation5 + $0x38] sm:$0xff]
    %v53 = vld [vmem:[%s2] sm:$0x3]
    %v55 = vlaneseq
    %v56 = vshrl.u32 %v55, 7
    %v57 = vsub.s32 0, %v56
    %v58 = vrot.slane %v53, %v57
    %v59 = vlaneseq
    %v60 = vshrl.u32 %v59, 7
    %v61 = vsub.s32 1, %v60
    %v62 = vrot.slane %v53, %v61
    %vm65 = vcmask 261120
    %v67 = vsel %vm65, %v43, 0
    %v70 = vsel %vm65, %v44, 0
    %72 = vmatprep.subr.mxu0 %v46
    %73 = vmatpush1.msra.mxu0 %v45
    %74 = vmatprep.subr.mxu0 %v48
    %75 = vmatpush1.msra.mxu0 %v47
    %76 = vmatprep.subr.mxu0 %v50
    %77 = vmatpush1.msra.mxu0 %v49
    %78 = vmatprep.subr.mxu0 %v52
    %79 = vmatpush1.msra.mxu0 %v51
    %80 = vmatprep.subr.mxu0 0.0
    %81 = vmatpush1.msra.mxu0 0.0
    %82 = vmatprep.subr.mxu0 0.0
    %83 = vmatpush1.msra.mxu0 0.0
    %84 = vmatprep.subr.mxu0 0.0
    %85 = vmatpush1.msra.mxu0 0.0
    %86 = vmatprep.subr.mxu0 0.0
    %87 = vmatpush1.msra.mxu0 0.0
    %88 = vmatprep.subr.mxu0 0.0
    %89 = vmatpush1.msra.mxu0 0.0
    %90 = vmatprep.subr.mxu0 0.0
    %91 = vmatpush1.msra.mxu0 0.0
    %92 = vmatprep.subr.mxu0 0.0
    %93 = vmatpush1.msra.mxu0 0.0
    %94 = vmatprep.subr.mxu0 0.0
    %95 = vmatpush1.msra.mxu0 0.0
    %96 = vmatprep.subr.mxu0 0.0
    %97 = vmatpush1.msra.mxu0 0.0
    %98 = vmatprep.subr.mxu0 0.0
    %99 = vmatpush1.msra.mxu0 0.0
    %100 = vmatprep.subr.mxu0 0.0
    %101 = vmatpush1.msra.mxu0 0.0
    %102 = vmatprep.subr.mxu0 0.0
    %103 = vmatpush1.msra.mxu0 0.0
    %104 = vmatprep.subr.mxu0 0.0
    %105 = vmatpush1.msra.mxu0 0.0
    %106 = vmatprep.subr.mxu0 0.0
    %107 = vmatpush1.msra.mxu0 0.0
    %108 = vmatprep.subr.mxu0 0.0
    %109 = vmatpush1.msra.mxu0 0.0
    %110 = vmatprep.subr.mxu0 0.0
    %111 = vmatpush1.msra.mxu0 0.0
    %112 = vmatprep.subr.mxu0 0.0
    %113 = vmatpush1.msra.mxu0 0.0
    %114 = vmatprep.subr.mxu0 0.0
    %115 = vmatpush1.msra.mxu0 0.0
    %116 = vmatprep.subr.mxu0 0.0
    %117 = vmatpush1.msra.mxu0 0.0
    %118 = vmatprep.subr.mxu0 0.0
    %119 = vmatpush1.msra.mxu0 0.0
    %120 = vmatprep.subr.mxu0 0.0
    %121 = vmatpush1.msra.mxu0 0.0
    %122 = vmatprep.subr.mxu0 0.0
    %123 = vmatpush1.msra.mxu0 0.0
    %124 = vmatprep.subr.mxu0 0.0
    %125 = vmatpush1.msra.mxu0 0.0
    %126 = vmatprep.subr.mxu0 0.0
    %127 = vmatpush1.msra.mxu0 0.0
    %128 = vmatprep.subr.mxu0 0.0
    %129 = vmatpush1.msra.mxu0 0.0
    %130 = vmatprep.subr.mxu0 0.0
    %131 = vmatpush1.msra.mxu0 0.0
    %132 = vmatprep.subr.mxu0 0.0
    %133 = vmatpush1.msra.mxu0 0.0
    %134 = vmatprep.subr.mxu0 0.0
    %135 = vmatpush1.msra.mxu0 0.0
    %136 = vmatprep.mubr.f32.mxu0 0.0
    %137 = vmatmul.mubr.f32.gmra.mrb[0].mxu0 %v67
    %v138 = vpop.f32.mrb[0].mxu0
    %v139 = vadd.f32 %v58, %v138
    %v140 = vpop.f32.mrb[0].mxu0
    %v141 = vadd.f32 %v62, %v140
    %142 = vmatprep.mubr.f32.mxu0 0.0
    %143 = vmatmul.mubr.f32.gmra.mrb[0].mxu0 %v70
    %v144 = vpop.f32.mrb[0].mxu0
    %v145 = vadd.f32 %v58, %v144
    %v146 = vpop.f32.mrb[0].mxu0
    %v147 = vadd.f32 %v62, %v146
    %148 = vdwg.mxu0
    %149 = vst [vmem:[#allocation7] sm:$0xff] %v139
    %150 = vst [vmem:[#allocation7 + $0x8] sm:$0xff] %v141
    %151 = vst [vmem:[#allocation7 + $0x10] sm:$0xff] %v145
    %152 = vst [vmem:[#allocation7 + $0x18] sm:$0xff] %v147
    // Predicated region
    $region22: #{unembed.1} parent=1 // pred_check
      _
    $region23: #{unembed.1} parent=1 // pred_check_branch
      %154 = sbr.rel (0) target = $region25
    $region24: #{unembed.1} parent=1 // pred_region
      %s156 = ssub.s32 512, 512
      %157 = vsyncadd [#allocation4], %s156
      %s158 = sshll.u32 [#allocation7], 4
      %s159 = int_to_ptr.vmem [resolvable:$true] %s158
      %164 = dma.vmem_to_hbm [thread:$0]  %s159, 512, %s3, [#allocation4], 256, 256, 16
    $region25: #{unembed.1} parent=1 // pred_fallthru
      _
    // Predicated region
    $region26: #{unembed.1} parent=1 // pred_check
      _
    $region27: #{unembed.1} parent=1 // pred_check_branch
      %166 = sbr.rel (0) target = $region29
    $region28: #{unembed.1} parent=1 // pred_region
      %167 = dma.done [#allocation4], 512
    $region29: #{unembed.1} parent=1 // pred_fallthru
      _
    %168 = vsyncpa [#allocation3], 1
    %169 = vsyncpa [#allocation6], 1
    %170 = vsyncpa [#allocation4], 1

</llo_original>
